<compile_context>
chip_gen: v6e
topology: v6e:2x2x1
jax: 0.10.0
libtpu: 0.0.40
codegen_flags: <defaults>
</compile_context>

<pallas_src>
import jax
import jax.numpy as jnp
from jax.experimental import pallas as pl
from jax.experimental.pallas import tpu as pltpu


def _dff_kernel(x_ref, s_ref, wx_ref, ws_ref, b_ref, o_ref):
    """One (spatial-tile, batch) block.

    x_ref : (1, C, TP)    x block, native dtype
    s_ref : (1, C, TP)    skip block, native dtype
    wx_ref: (1, CROW, C)  per-batch folded weights (bf16):
                            rows [0:C] = att_x[n]   * W_redu[:, :C]
                            row  [C]   = w1 (spatial-gate weight, unscaled)
    ws_ref: (1, CROW, C)  same for the skip half (w2 in row C)
    b_ref : (1,) SMEM     b1 + b2
    o_ref : (1, C, TP)    output block, native dtype
    """
    C = o_ref.shape[1]
    xb = x_ref[0].astype(jnp.bfloat16)      # no-op when the input is bf16
    sb = s_ref[0].astype(jnp.bfloat16)

    # A single MXU pass yields both the attention-scaled reduction conv
    # (rows 0..C-1) and the spatial-gate pre-activation (row C).
    red = jnp.dot(wx_ref[0], xb, preferred_element_type=jnp.float32)
    red = red + jnp.dot(ws_ref[0], sb, preferred_element_type=jnp.float32)

    gate = jax.nn.sigmoid(red[C:C + 1] + b_ref[0])          # (1, TP)
    o_ref[0] = (red[:C] * gate).astype(o_ref.dtype)


def _vmem_budget_bytes():
    cap = 64 * 2**20                       # conservative fallback (v7x physical)
    try:
        info = pltpu.get_tpu_info()
        cap = int(getattr(info, "vmem_capacity_bytes", cap))
    except Exception:
        pass
    return min(int(cap * 3 // 4), 100 * 2**20)


def _block_vmem_bytes(C, crow, tile_p, in_b, out_b, n_in_buf):
    io = C * tile_p * in_b * n_in_buf * 2        # x + skip input blocks
    io += C * tile_p * out_b * 2                 # output block (double-buffered)
    wts = crow * C * 2 * 2 * 2                   # wx + ws (bf16), double-buffered
    tmp = crow * tile_p * 4 + 2 * C * tile_p * 2 + tile_p * 4   # in-kernel temps
    return io + wts + tmp


def dff_forward(x, skip, w_atten, w_redu, w1, b1, w2, b2, *, tile_p=None):
    """DFF.forward.  x, skip: (N, C, H, W) NCHW; returns (N, C, H, W) in x.dtype."""
    N, C, H, W = x.shape
    assert skip.shape == x.shape
    C2 = 2 * C
    P = H * W
    out_dtype = x.dtype
    in_b = jnp.dtype(x.dtype).itemsize
    out_b = jnp.dtype(out_dtype).itemsize

    # ---- channel attention path (tiny; plain JAX, f32 accumulation) ---------
    mx = jnp.mean(x, axis=(2, 3), dtype=jnp.float32)           # (N, C)
    ms = jnp.mean(skip, axis=(2, 3), dtype=jnp.float32)        # (N, C)
    pooled = jnp.concatenate([mx, ms], axis=1)                 # (N, 2C)
    wa = w_atten.reshape(C2, C2).astype(jnp.float32)
    att = jax.nn.sigmoid(pooled @ wa.T)                        # (N, 2C)

    # ---- fold attention into conv_redu, append the gate row, pad rows -------
    crow = ((C + 1 + 7) // 8) * 8          # C conv rows + 1 gate row, sublane aligned
    wr = w_redu.reshape(C, C2).astype(jnp.float32)
    w1r = jnp.broadcast_to(w1.reshape(1, 1, C).astype(jnp.float32), (N, 1, C))
    w2r = jnp.broadcast_to(w2.reshape(1, 1, C).astype(jnp.float32), (N, 1, C))
    wx = jnp.concatenate([wr[None, :, :C] * att[:, None, :C], w1r], axis=1)
    ws = jnp.concatenate([wr[None, :, C:] * att[:, None, C:], w2r], axis=1)
    pad_rows = crow - (C + 1)
    if pad_rows:
        wx = jnp.pad(wx, ((0, 0), (0, pad_rows), (0, 0)))
        ws = jnp.pad(ws, ((0, 0), (0, pad_rows), (0, 0)))
    wx = wx.astype(jnp.bfloat16)                                # (N, crow, C)
    ws = ws.astype(jnp.bfloat16)
    bsum = (b1.reshape(()) + b2.reshape(())).astype(jnp.float32).reshape(1)

    # ---- spatial layout: (N, C, H*W) views, no HBM copies --------------------
    xf = x.reshape(N, C, P)
    sf = skip.reshape(N, C, P)

    budget = _vmem_budget_bytes()
    if tile_p is None:
        cap = 128
        for cand in range(4096, 127, -128):           # biggest tile that fits VMEM
            if _block_vmem_bytes(C, crow, cand, in_b, out_b, 2) <= budget:
                cap = cand
                break
        tile_p = None
        for m in range(cap // 128, 0, -1):            # largest 128-multiple dividing P
            t = m * 128
            if P % t == 0:
                tile_p = t
                break
        if tile_p is None:
            # No lane-aligned divisor: full extent if it fits, else a ragged
            # last block (blocked out_spec clips the out-of-range writes).
            tile_p = P if P <= cap else cap

    num_tiles = pl.cdiv(P, tile_p)
    grid = (num_tiles, N)      # spatial axis leads -> dual-TC work even when N == 1

    n_in_buf = 2
    if (num_tiles * N >= 3
            and _block_vmem_bytes(C, crow, tile_p, in_b, out_b, 3) <= budget):
        n_in_buf = 3

    def _act_spec():
        if n_in_buf == 3:
            return pl.BlockSpec((1, C, tile_p), lambda j, n: (n, 0, j),
                                pipeline_mode=pl.Buffered(3))
        return pl.BlockSpec((1, C, tile_p), lambda j, n: (n, 0, j))

    out = pl.pallas_call(
        _dff_kernel,
        out_shape=jax.ShapeDtypeStruct((N, C, P), out_dtype),
        grid_spec=pltpu.PrefetchScalarGridSpec(
            num_scalar_prefetch=0,
            grid=grid,
            in_specs=[
                _act_spec(),                                          # x
                _act_spec(),                                          # skip
                pl.BlockSpec((1, crow, C), lambda j, n: (n, 0, 0)),   # wx (folded)
                pl.BlockSpec((1, crow, C), lambda j, n: (n, 0, 0)),   # ws (folded)
                pl.BlockSpec(memory_space=pltpu.SMEM),                # b1 + b2
            ],
            out_specs=pl.BlockSpec((1, C, tile_p), lambda j, n: (n, 0, j)),
        ),
        compiler_params=pltpu.CompilerParams(
            dimension_semantics=("parallel", "parallel"),
            vmem_limit_bytes=budget),
    )(xf, sf, wx, ws, bsum)

    return out.reshape(N, C, H, W)


def _reference(x, skip, w_atten, w_redu, w1, b1, w2, b2):
    """Pure-JAX (f32) mirror of the PyTorch DFF.forward."""
    x = x.astype(jnp.float32)
    skip = skip.astype(jnp.float32)
    out = jnp.concatenate([x, skip], axis=1)                      # (N, 2C, H, W)
    C2 = out.shape[1]
    C = x.shape[1]
    pooled = jnp.mean(out, axis=(2, 3), keepdims=True)            # (N, 2C, 1, 1)
    wa = w_atten.reshape(C2, C2)
    att = jax.nn.sigmoid(jnp.einsum('oi,nihw->nohw', wa, pooled))
    out = out * att
    wr = w_redu.reshape(C, C2)
    out = jnp.einsum('oi,nihw->nohw', wr, out)
    g = (jnp.einsum('oi,nihw->nohw', w1.reshape(1, C), x) + b1.reshape(1, 1, 1, 1)
         + jnp.einsum('oi,nihw->nohw', w2.reshape(1, C), skip) + b2.reshape(1, 1, 1, 1))
    return out * jax.nn.sigmoid(g)


if __name__ == "__main__":
    key = jax.random.PRNGKey(0)
    ks = jax.random.split(key, 8)

    N, dim, H, W = 2, 4, 16, 16

    x = jax.random.normal(ks[0], (N, dim, H, W), dtype=jnp.float32)
    skip = jax.random.normal(ks[1], (N, dim, H, W), dtype=jnp.float32)
    w_atten = 0.1 * jax.random.normal(ks[2], (2 * dim, 2 * dim, 1, 1), dtype=jnp.float32)
    w_redu = 0.1 * jax.random.normal(ks[3], (dim, 2 * dim, 1, 1), dtype=jnp.float32)
    w1 = 0.1 * jax.random.normal(ks[4], (1, dim, 1, 1), dtype=jnp.float32)
    b1 = 0.1 * jax.random.normal(ks[5], (1,), dtype=jnp.float32)
    w2 = 0.1 * jax.random.normal(ks[6], (1, dim, 1, 1), dtype=jnp.float32)
    b2 = 0.1 * jax.random.normal(ks[7], (1,), dtype=jnp.float32)

    ref = _reference(x, skip, w_atten, w_redu, w1, b1, w2, b2)

    # f32 activations (dtype passthrough; bf16 MXU with f32 accumulation inside).
    out = jax.block_until_ready(dff_forward(x, skip, w_atten, w_redu, w1, b1, w2, b2))
    assert out.shape == (N, dim, H, W) and out.dtype == jnp.float32
    assert jnp.allclose(out, ref, rtol=2e-2, atol=2e-2), "f32 mismatch vs reference"

    # bf16 activations in HBM (the recommended low-bandwidth path): bf16 in, bf16 out.
    out_bf16 = jax.block_until_ready(
        dff_forward(x.astype(jnp.bfloat16), skip.astype(jnp.bfloat16),
                    w_atten, w_redu, w1, b1, w2, b2))
    assert out_bf16.dtype == jnp.bfloat16
    assert jnp.allclose(out_bf16.astype(jnp.float32), ref, rtol=6e-2, atol=6e-2), \
        "bf16 mismatch vs reference"

    print("KERNEL_OK")
</pallas_src>

<mosaic_0001>
module attributes {stable_mosaic.version = 11 : i64} {
  func.func @_dff_kernel(%arg0: i32, %arg1: i32, %arg2: memref<1x4x256xf32, #tpu.memory_space<vmem>>, %arg3: memref<1x4x256xf32, #tpu.memory_space<vmem>>, %arg4: memref<1x8x4xbf16, #tpu.memory_space<vmem>>, %arg5: memref<1x8x4xbf16, #tpu.memory_space<vmem>>, %arg6: memref<1xf32, #tpu.memory_space<smem>>, %arg7: memref<1x4x256xf32, #tpu.memory_space<vmem>>) attributes {dimension_semantics = [#tpu.dimension_semantics<parallel>, #tpu.dimension_semantics<parallel>], iteration_bounds = array<i64: 1, 2>, scalar_prefetch = 0 : i64, scratch_operands = 0 : i64, tpu.core_type = #tpu.core_type<tc>, window_params = [{transform_indices = @transform_0, window_bounds = array<i64: 1, 4, 256>}, {transform_indices = @transform_1, window_bounds = array<i64: 1, 4, 256>}, {transform_indices = @transform_2, window_bounds = array<i64: 1, 8, 4>}, {transform_indices = @transform_3, window_bounds = array<i64: 1, 8, 4>}, {transform_indices = @transform_4, window_bounds = array<i64: 1>}, {transform_indices = @transform_5, window_bounds = array<i64: 1, 4, 256>}]} {
    %c0 = arith.constant 0 : index
    %c0_0 = arith.constant 0 : index
    %c0_1 = arith.constant 0 : index
    %0 = vector.load %arg2[%c0, %c0_0, %c0_1] : memref<1x4x256xf32, #tpu.memory_space<vmem>>, vector<1x4x256xf32>
    %1 = vector.shape_cast %0 : vector<1x4x256xf32> to vector<4x256xf32>
    %2 = arith.truncf %1 : vector<4x256xf32> to vector<4x256xbf16>
    %c0_2 = arith.constant 0 : index
    %c0_3 = arith.constant 0 : index
    %c0_4 = arith.constant 0 : index
    %3 = vector.load %arg3[%c0_2, %c0_3, %c0_4] : memref<1x4x256xf32, #tpu.memory_space<vmem>>, vector<1x4x256xf32>
    %4 = vector.shape_cast %3 : vector<1x4x256xf32> to vector<4x256xf32>
    %5 = arith.truncf %4 : vector<4x256xf32> to vector<4x256xbf16>
    %c0_5 = arith.constant 0 : index
    %c0_6 = arith.constant 0 : index
    %c0_7 = arith.constant 0 : index
    %6 = vector.load %arg4[%c0_5, %c0_6, %c0_7] : memref<1x8x4xbf16, #tpu.memory_space<vmem>>, vector<1x8x4xbf16>
    %7 = vector.shape_cast %6 : vector<1x8x4xbf16> to vector<8x4xbf16>
    %cst = arith.constant dense<0.000000e+00> : vector<8x256xf32>
    %8 = tpu.matmul %7, %2, %cst {dimension_numbers = #tpu.dot_dimension_numbers<[1], [0], [0], [1], [0, 0, 1, 1], [], []>} : vector<8x4xbf16>, vector<4x256xbf16>, vector<8x256xf32> -> vector<8x256xf32>
    %c0_8 = arith.constant 0 : index
    %c0_9 = arith.constant 0 : index
    %c0_10 = arith.constant 0 : index
    %9 = vector.load %arg5[%c0_8, %c0_9, %c0_10] : memref<1x8x4xbf16, #tpu.memory_space<vmem>>, vector<1x8x4xbf16>
    %10 = vector.shape_cast %9 : vector<1x8x4xbf16> to vector<8x4xbf16>
    %cst_11 = arith.constant dense<0.000000e+00> : vector<8x256xf32>
    %11 = tpu.matmul %10, %5, %cst_11 {dimension_numbers = #tpu.dot_dimension_numbers<[1], [0], [0], [1], [0, 0, 1, 1], [], []>} : vector<8x4xbf16>, vector<4x256xbf16>, vector<8x256xf32> -> vector<8x256xf32>
    %12 = arith.addf %8, %11 : vector<8x256xf32>
    %13 = vector.extract_strided_slice %12 {offsets = [4, 0], sizes = [1, 256], strides = [1, 1]} : vector<8x256xf32> to vector<1x256xf32>
    %c0_12 = arith.constant 0 : index
    %14 = memref.load %arg6[%c0_12] : memref<1xf32, #tpu.memory_space<smem>>
    %15 = vector.broadcast %14 : f32 to vector<1x256xf32>
    %16 = arith.addf %13, %15 : vector<1x256xf32>
    %17 = arith.negf %16 : vector<1x256xf32>
    %18 = math.exp %17 : vector<1x256xf32>
    %cst_13 = arith.constant 1.000000e+00 : f32
    %19 = vector.broadcast %cst_13 : f32 to vector<1x256xf32>
    %20 = arith.addf %19, %18 : vector<1x256xf32>
    %21 = arith.divf %19, %20 : vector<1x256xf32>
    %22 = vector.extract_strided_slice %12 {offsets = [0, 0], sizes = [4, 256], strides = [1, 1]} : vector<8x256xf32> to vector<4x256xf32>
    %23 = vector.broadcast %21 : vector<1x256xf32> to vector<4x256xf32>
    %24 = arith.mulf %22, %23 : vector<4x256xf32>
    %c0_14 = arith.constant 0 : index
    %c0_15 = arith.constant 0 : index
    %c0_16 = arith.constant 0 : index
    %25 = vector.load %arg7[%c0_14, %c0_15, %c0_16] : memref<1x4x256xf32, #tpu.memory_space<vmem>>, vector<1x4x256xf32>
    %26 = vector.shape_cast %25 : vector<1x4x256xf32> to vector<4x256xf32>
    %27 = vector.shape_cast %24 : vector<4x256xf32> to vector<1x4x256xf32>
    tpu.vector_store %arg7[%c0_14, %c0_15, %c0_16], %27 {strides = array<i32>} : memref<1x4x256xf32, #tpu.memory_space<vmem>>, vector<1x4x256xf32>,
    return
  }
  func.func @transform_0(%arg0: i32, %arg1: i32) -> (i32, i32, i32) {
    %c0_i32 = arith.constant 0 : i32
    %c0_i32_0 = arith.constant 0 : i32
    return %arg1, %c0_i32, %arg0 : i32, i32, i32
  }
  func.func @transform_1(%arg0: i32, %arg1: i32) -> (i32, i32, i32) {
    %c0_i32 = arith.constant 0 : i32
    %c0_i32_0 = arith.constant 0 : i32
    return %arg1, %c0_i32, %arg0 : i32, i32, i32
  }
  func.func @transform_2(%arg0: i32, %arg1: i32) -> (i32, i32, i32) {
    %c0_i32 = arith.constant 0 : i32
    %c0_i32_0 = arith.constant 0 : i32
    %c0_i32_1 = arith.constant 0 : i32
    return %arg1, %c0_i32, %c0_i32_0 : i32, i32, i32
  }
  func.func @transform_3(%arg0: i32, %arg1: i32) -> (i32, i32, i32) {
    %c0_i32 = arith.constant 0 : i32
    %c0_i32_0 = arith.constant 0 : i32
    %c0_i32_1 = arith.constant 0 : i32
    return %arg1, %c0_i32, %c0_i32_0 : i32, i32, i32
  }
  func.func @transform_4(%arg0: i32, %arg1: i32) -> i32 {
    %c0_i32 = arith.constant 0 : i32
    %c0_i32_0 = arith.constant 0 : i32
    return %c0_i32 : i32
  }
  func.func @transform_5(%arg0: i32, %arg1: i32) -> (i32, i32, i32) {
    %c0_i32 = arith.constant 0 : i32
    %c0_i32_0 = arith.constant 0 : i32
    return %arg1, %c0_i32, %arg0 : i32, i32, i32
  }
}

</mosaic_0001>

<llo_original>
// kernel: tpu_custom_call.1
$region0: #{tpu_custom_call.1}
  #allocation0 [shape = 'u32[]', space=smem, size = 0x4, offset = 0x4, fixed_abs, tag = 'smem constant byte address 0x4 - core index']
  #allocation1 [shape = 'u32[144,128]{1,0:T(1,128)}', space=vmem, size = 0x12000, scoped, tag = 'internal scratch']
  #allocation2 [shape = 'f32[1]{0:T(128)S(6)}', space=smem, size = 0x200, scoped, tag = 'scoped memory for tpu_custom_call.1']
  %s0 = inlined_call_operand.vmem [shape: f32[2,4,256], index: 0, kind: input, shape index: {}]
  %s1 = inlined_call_operand.hbm [shape: f32[2,4,256], index: 1, kind: input, shape index: {}]
  %s2 = inlined_call_operand.vmem [shape: bf16[2,8,4], index: 2, kind: input, shape index: {}]
  %s3 = inlined_call_operand.vmem [shape: bf16[2,8,4], index: 3, kind: input, shape index: {}]
  %s4 = inlined_call_operand.<no memory space> [shape: f32[1], index: 4, kind: input, shape index: {}]
  %s5 = inlined_call_operand.hbm [shape: f32[2,4,256], index: 5, kind: output, shape index: {}]
  %s6 = sld [smem:[#allocation0]]
  $region57: #{tpu_custom_call.1} parent=0
    _
  %s8 = ssub.s32 1, %s6
  %s9 = scalar_select 0, %s8, %s6
  %10 = sst [smem:[#allocation2]] %s4
  $region1: #{tpu_custom_call.1} parent=0
    #allocation3 [shape = 'u8[8192]{0}', space=vmem, size = 0x2000, scoped, tag = 'input window, operand 1']
    #allocation4 [shape = 's32[2]{0}', space=sflag, size = 0x8, scoped, tag = 'scoped memory for tpu_custom_call.1']
    #allocation5 [shape = 's32[2]{0}', space=sflag, size = 0x8, scoped, tag = 'scoped memory for tpu_custom_call.1']
    #allocation6 [shape = 'u8[8192]{0}', space=vmem, size = 0x2000, scoped, tag = 'output window, operand 0']
    %11 = vsyncpa [#allocation4], 0
    %s12 = scalar_lea.sflag [#allocation4], 1
    %13 = vsyncpa %s12, 0
    %14 = vsyncpa [#allocation5], 0
    %s15 = scalar_lea.sflag [#allocation5], 1
    %16 = vsyncpa %s15, 0
    loop: start=0, step=1, limit=4
    $region2: #{tpu_custom_call.1} parent=1 // loop_pre_header
      _
    $region3: #{tpu_custom_call.1} parent=1 // loop_header
      %s18 = sphi 0, %s22
      %p19 = scmp.ge.s32.totalorder %s18, 4
      %s25 = sphi 0, %s37
      %s26 = sphi 0, %s33
      %s27 = sphi 0, %s25
      %s28 = sphi 0, %s26
      %s29 = sphi 0, %s27
      %s30 = sphi 0, %s28
      %s42 = sphi 0, %s44
      %s45 = sphi 0, %s42
      %s46 = sphi 0, %s45
      %s62 = sphi 0, %s46
      %s70 = sphi 0, %s72
      %s73 = sphi 0, %s70
      %s74 = sphi 0, %s73
      %s90 = sphi 0, %s74
      %s96 = sphi 0, %s98
      %s99 = sphi 0, %s96
      %s100 = sphi 0, %s99
      %s116 = sphi 0, %s100
      %s122 = sphi 0, %s124
      %s125 = sphi 0, %s122
      %s126 = sphi 0, %s125
      %s142 = sphi 0, %s126
      %s146 = sphi 0, %s146
      %s148 = sphi 0, %s146
      %s149 = sphi 0, %s148
      %s163 = sphi 0, %s149
      %s171 = sphi 0, %s173
      %s174 = sphi 0, %s171
      %s175 = sphi 0, %s174
      %s191 = sphi 0, %s175
    $region4: #{tpu_custom_call.1} parent=1 // loop_header_branch
      %21 = sbr.rel (%p19) target = $region8
    $region5: #{tpu_custom_call.1} parent=1 // loop_body
      %s23 = ssub.s32 %s18, 1
      %s24 = ssub.s32 %s18, 2
      %s31 = sadd.s32 1, %s26
      %p32 = scmp.ge.s32.totalorder %s31, 2
      %s33 = scalar_select %p32, 0, %s31
      %s34 = sadd.s32 1, %s25
      %s35 = scalar_select %p32, %s34, %s25
      %p36 = scmp.ge.s32.totalorder %s35, 1
      %s37 = scalar_select %p36, 0, %s35
      %s38 = ssub.s32 %s26, %s33
      %s39 = ssub.s32 %s25, %s37
      %s40 = sor.u32 %s38, %s39
      %p41 = scmp.eq.s32.totalorder %s40, 0
      %s43 = sadd.s32 %s42, 1
      %s44 = scalar_select %p41, %s42, %s43
      %p47 = pneg %p41
      %p48 = scmp.eq.s32.totalorder %s18, 1
      %p49 = por %p47, %p48
      %p50 = scmp.ne.s32.totalorder %s42, %s45
      %p51 = scmp.eq.s32.totalorder %s18, 0
      %p52 = por %p50, %p51
      %p53 = scmp.ne.s32.totalorder %s42, %s45
      %p54 = scmp.eq.s32.totalorder %s23, 1
      %p55 = por %p53, %p54
      %p56 = scmp.ne.s32.totalorder %s45, %s46
      %p57 = scmp.eq.s32.totalorder %s23, 0
      %p58 = por %p56, %p57
      %p59 = scmp.ne.s32.totalorder %s45, %s46
      %p60 = scmp.eq.s32.totalorder %s24, 1
      %p61 = por %p59, %p60
      %p63 = scmp.ne.s32.totalorder %s46, %s62
      %p64 = scmp.eq.s32.totalorder %s24, 0
      %p65 = por %p63, %p64
      %s66 = ssub.s32 %s26, %s33
      %s67 = ssub.s32 %s25, %s37
      %s68 = sor.u32 %s66, %s67
      %p69 = scmp.eq.s32.totalorder %s68, 0
      %s71 = sadd.s32 %s70, 1
      %s72 = scalar_select %p69, %s70, %s71
      %p75 = pneg %p69
      %p76 = scmp.eq.s32.totalorder %s18, 1
      %p77 = por %p75, %p76
      %p78 = scmp.ne.s32.totalorder %s70, %s73
      %p79 = scmp.eq.s32.totalorder %s18, 0
      %p80 = por %p78, %p79
      %p81 = scmp.ne.s32.totalorder %s70, %s73
      %p82 = scmp.eq.s32.totalorder %s23, 1
      %p83 = por %p81, %p82
      %p84 = scmp.ne.s32.totalorder %s73, %s74
      %p85 = scmp.eq.s32.totalorder %s23, 0
      %p86 = por %p84, %p85
      %p87 = scmp.ne.s32.totalorder %s73, %s74
      %p88 = scmp.eq.s32.totalorder %s24, 1
      %p89 = por %p87, %p88
      %p91 = scmp.ne.s32.totalorder %s74, %s90
      %p92 = scmp.eq.s32.totalorder %s24, 0
      %p93 = por %p91, %p92
      %s94 = ssub.s32 %s26, %s33
      %p95 = scmp.eq.s32.totalorder %s94, 0
      %s97 = sadd.s32 %s96, 1
      %s98 = scalar_select %p95, %s96, %s97
      %p101 = pneg %p95
      %p102 = scmp.eq.s32.totalorder %s18, 1
      %p103 = por %p101, %p102
      %p104 = scmp.ne.s32.totalorder %s96, %s99
      %p105 = scmp.eq.s32.totalorder %s18, 0
      %p106 = por %p104, %p105
      %p107 = scmp.ne.s32.totalorder %s96, %s99
      %p108 = scmp.eq.s32.totalorder %s23, 1
      %p109 = por %p107, %p108
      %p110 = scmp.ne.s32.totalorder %s99, %s100
      %p111 = scmp.eq.s32.totalorder %s23, 0
      %p112 = por %p110, %p111
      %p113 = scmp.ne.s32.totalorder %s99, %s100
      %p114 = scmp.eq.s32.totalorder %s24, 1
      %p115 = por %p113, %p114
      %p117 = scmp.ne.s32.totalorder %s100, %s116
      %p118 = scmp.eq.s32.totalorder %s24, 0
      %p119 = por %p117, %p118
      %s120 = ssub.s32 %s26, %s33
      %p121 = scmp.eq.s32.totalorder %s120, 0
      %s123 = sadd.s32 %s122, 1
      %s124 = scalar_select %p121, %s122, %s123
      %p127 = pneg %p121
      %p128 = scmp.eq.s32.totalorder %s18, 1
      %p129 = por %p127, %p128
      %p130 = scmp.ne.s32.totalorder %s122, %s125
      %p131 = scmp.eq.s32.totalorder %s18, 0
      %p132 = por %p130, %p131
      %p133 = scmp.ne.s32.totalorder %s122, %s125
      %p134 = scmp.eq.s32.totalorder %s23, 1
      %p135 = por %p133, %p134
      %p136 = scmp.ne.s32.totalorder %s125, %s126
      %p137 = scmp.eq.s32.totalorder %s23, 0
      %p138 = por %p136, %p137
      %p139 = scmp.ne.s32.totalorder %s125, %s126
      %p140 = scmp.eq.s32.totalorder %s24, 1
      %p141 = por %p139, %p140
      %p143 = scmp.ne.s32.totalorder %s126, %s142
      %p144 = scmp.eq.s32.totalorder %s24, 0
      %p145 = por %p143, %p144
      %s147 = sadd.s32 %s146, 1
      %p150 = scmp.eq.s32.totalorder %s18, 1
      %p151 = scmp.ne.s32.totalorder %s146, %s148
      %p152 = scmp.eq.s32.totalorder %s18, 0
      %p153 = por %p151, %p152
      %p154 = scmp.ne.s32.totalorder %s146, %s148
      %p155 = scmp.eq.s32.totalorder %s23, 1
      %p156 = por %p154, %p155
      %p157 = scmp.ne.s32.totalorder %s148, %s149
      %p158 = scmp.eq.s32.totalorder %s23, 0
      %p159 = por %p157, %p158
      %p160 = scmp.ne.s32.totalorder %s148, %s149
      %p161 = scmp.eq.s32.totalorder %s24, 1
      %p162 = por %p160, %p161
      %p164 = scmp.ne.s32.totalorder %s149, %s163
      %p165 = scmp.eq.s32.totalorder %s24, 0
      %p166 = por %p164, %p165
      %s167 = ssub.s32 %s26, %s33
      %s168 = ssub.s32 %s25, %s37
      %s169 = sor.u32 %s167, %s168
      %p170 = scmp.eq.s32.totalorder %s169, 0
      %s172 = sadd.s32 %s171, 1
      %s173 = scalar_select %p170, %s171, %s172
      %p176 = pneg %p170
      %p177 = scmp.eq.s32.totalorder %s18, 1
      %p178 = por %p176, %p177
      %p179 = scmp.ne.s32.totalorder %s171, %s174
      %p180 = scmp.eq.s32.totalorder %s18, 0
      %p181 = por %p179, %p180
      %p182 = scmp.ne.s32.totalorder %s171, %s174
      %p183 = scmp.eq.s32.totalorder %s23, 1
      %p184 = por %p182, %p183
      %p185 = scmp.ne.s32.totalorder %s174, %s175
      %p186 = scmp.eq.s32.totalorder %s23, 0
      %p187 = por %p185, %p186
      %p188 = scmp.ne.s32.totalorder %s174, %s175
      %p189 = scmp.eq.s32.totalorder %s24, 1
      %p190 = por %p188, %p189
      %p192 = scmp.ne.s32.totalorder %s175, %s191
      %p193 = scmp.eq.s32.totalorder %s24, 0
      %p194 = por %p192, %p193
      %p195 = scmp.le.s32.totalorder 1, %s18
      %p196 = scmp.lt.s32.totalorder %s18, 3
      %p197 = pnand %p195, %p196
      %p198 = pneg %p197
      // Predicated region
      $region9: #{tpu_custom_call.1} parent=5 // pred_check
        _
      $region10: #{tpu_custom_call.1} parent=5 // pred_check_branch
        %200 = sbr.rel (%p197) target = $region12
      $region11: #{tpu_custom_call.1} parent=5 // pred_region
        %s201 = ssub.s32 %s18, 1
        // Predicated region
        $region13: #{tpu_custom_call.1} parent=11 // pred_check
          %p202 = pneg %p159
        $region14: #{tpu_custom_call.1} parent=11 // pred_check_branch
          %204 = sbr.rel (%p202) target = $region16
        $region15: #{tpu_custom_call.1} parent=11 // pred_region
          _
        $region16: #{tpu_custom_call.1} parent=11 // pred_fallthru
          _
      $region12: #{tpu_custom_call.1} parent=5 // pred_fallthru
        _
      %p205 = scmp.lt.s32.totalorder %s18, 2
      // Predicated region
      $region17: #{tpu_custom_call.1} parent=5 // pred_check
        %p206 = pneg %p205
      $region18: #{tpu_custom_call.1} parent=5 // pred_check_branch
        %208 = sbr.rel (%p206) target = $region20
      $region19: #{tpu_custom_call.1} parent=5 // pred_region
        // Predicated region
        $region21: #{tpu_custom_call.1} parent=19 // pred_check
          %p209 = pneg %p52
        $region22: #{tpu_custom_call.1} parent=19 // pred_check_branch
          %211 = sbr.rel (%p209) target = $region24
        $region23: #{tpu_custom_call.1} parent=19 // pred_region
          %s212 = smul.u32 2, %s25
          %p213 = scmp.lt.s32.totalorder %s26, 1
          %s214 = scalar_select %p213, %s26, 1
          %p215 = scmp.lt.s32.totalorder %s212, 1
          %s216 = scalar_select %p215, %s212, 1
          %s217 = smul.addr %s214, 2
          %s218 = sadd.s32 %s216, %s217
          %s219 = smul.addr %s218, 4
          %s220 = scalar_lea.vmem %s0, %s219
          %s221 = smul.u32 2, %s25
        $region24: #{tpu_custom_call.1} parent=19 // pred_fallthru
          _
        // Predicated region
        $region25: #{tpu_custom_call.1} parent=19 // pred_check
          %p222 = pneg %p80
        $region26: #{tpu_custom_call.1} parent=19 // pred_check_branch
          %224 = sbr.rel (%p222) target = $region28
        $region27: #{tpu_custom_call.1} parent=19 // pred_region
          %s225 = sand.u32 %s70, 1
          %s226 = scalar_lea.sflag [#allocation4], %s225
          %s227 = sand.u32 %s70, 1
          %s228 = smul.addr %s227, 8
          %s229 = scalar_lea.vmem [#allocation3], %s228
          %s230 = smul.u32 2, %s25
          %s232 = ssub.s32 128, 128
          %233 = vsyncadd %s226, %s232
          %s234 = smul.addr %s26, 2
          %s235 = sadd.s32 %s230, %s234
          %s236 = smul.addr %s235, 64
          %s237 = scalar_lea.hbm %s1, %s236
          %s239 = sshll.u32 %s229, 4
          %s240 = int_to_ptr.vmem [resolvable:$true] %s239
          %242 = dma.hbm_to_vmem [thread:$0]  %s237, 128, %s240, %s226
        $region28: #{tpu_custom_call.1} parent=19 // pred_fallthru
          _
        // Predicated region
        $region29: #{tpu_custom_call.1} parent=19 // pred_check
          %p243 = pneg %p106
        $region30: #{tpu_custom_call.1} parent=19 // pred_check_branch
          %245 = sbr.rel (%p243) target = $region32
        $region31: #{tpu_custom_call.1} parent=19 // pred_region
          %p246 = scmp.lt.s32.totalorder %s26, 1
          %s247 = scalar_select %p246, %s26, 1
          %s248 = smul.addr %s247, 4
          %s249 = scalar_lea.vmem %s2, %s248
        $region32: #{tpu_custom_call.1} parent=19 // pred_fallthru
          _
        // Predicated region
        $region33: #{tpu_custom_call.1} parent=19 // pred_check
          %p250 = pneg %p132
        $region34: #{tpu_custom_call.1} parent=19 // pred_check_branch
          %252 = sbr.rel (%p250) target = $region36
        $region35: #{tpu_custom_call.1} parent=19 // pred_region
          %p253 = scmp.lt.s32.totalorder %s26, 1
          %s254 = scalar_select %p253, %s26, 1
          %s255 = smul.addr %s254, 4
          %s256 = scalar_lea.vmem %s3, %s255
        $region36: #{tpu_custom_call.1} parent=19 // pred_fallthru
          _
      $region20: #{tpu_custom_call.1} parent=5 // pred_fallthru
        _
      %p257 = scmp.le.s32.totalorder 1, %s18
      %p258 = scmp.lt.s32.totalorder %s18, 3
      %p259 = pnand %p257, %p258
      %p260 = pneg %p259
      // Predicated region
      $region37: #{tpu_custom_call.1} parent=5 // pred_check
        _
      $region38: #{tpu_custom_call.1} parent=5 // pred_check_branch
        %262 = sbr.rel (%p259) target = $region40
      $region39: #{tpu_custom_call.1} parent=5 // pred_region
        %s263 = ssub.s32 %s18, 1
        %s264 = sand.u32 %s73, 1
        %s265 = scalar_lea.sflag [#allocation4], %s264
        %s266 = sand.u32 %s73, 1
        %s267 = smul.addr %s266, 8
        %s268 = scalar_lea.vmem [#allocation3], %s267
        // Predicated region
        $region41: #{tpu_custom_call.1} parent=39 // pred_check
          %p269 = pneg %p86
        $region42: #{tpu_custom_call.1} parent=39 // pred_check_branch
          %271 = sbr.rel (%p269) target = $region44
        $region43: #{tpu_custom_call.1} parent=39 // pred_region
          %272 = dma.done %s265, 128
        $region44: #{tpu_custom_call.1} parent=39 // pred_fallthru
          _
        %s273 = smul.u32 2, %s27
        %p274 = scmp.lt.s32.totalorder %s28, 1
        %s275 = scalar_select %p274, %s28, 1
        %p276 = scmp.lt.s32.totalorder %s273, 1
        %s277 = scalar_select %p276, %s273, 1
        %s278 = smul.addr %s275, 2
        %s279 = sadd.s32 %s277, %s278
        %s280 = smul.addr %s279, 4
        %s281 = scalar_lea.vmem %s0, %s280
        %p282 = pneg %p58
        %p283 = pneg %p55
        %s284 = sand.u32 %s73, 1
        %s285 = scalar_lea.sflag [#allocation4], %s284
        %s286 = sand.u32 %s73, 1
        %s287 = smul.addr %s286, 8
        %s288 = scalar_lea.vmem [#allocation3], %s287
        %p289 = pneg %p86
        %p290 = pneg %p83
        %p291 = scmp.lt.s32.totalorder %s28, 1
        %s292 = scalar_select %p291, %s28, 1
        %s293 = smul.addr %s292, 4
        %s294 = scalar_lea.vmem %s2, %s293
        %p295 = pneg %p112
        %p296 = pneg %p109
        %p297 = scmp.lt.s32.totalorder %s28, 1
        %s298 = scalar_select %p297, %s28, 1
        %s299 = smul.addr %s298, 4
        %s300 = scalar_lea.vmem %s3, %s299
        %p301 = pneg %p138
        %p302 = pneg %p135
        %p303 = pneg %p159
        %p304 = pneg %p156
        %p305 = pneg %p187
        %p306 = pneg %p184
        %s307 = sand.u32 %s174, 1
        %s308 = scalar_lea.sflag [#allocation5], %s307
        %s309 = sand.u32 %s174, 1
        %s310 = smul.addr %s309, 8
        %s311 = scalar_lea.vmem [#allocation6], %s310
        %s312 = smul.u32 2, %s27
        %p313 = scmp.lt.s32.totalorder %s28, 1
        %s314 = scalar_select %p313, %s28, 1
        %p315 = scmp.lt.s32.totalorder %s312, 1
        %s316 = scalar_select %p315, %s312, 1
        %s317 = smul.addr %s314, 2
        %s318 = sadd.s32 %s316, %s317
        %s319 = smul.addr %s318, 4
        %s320 = scalar_lea.vmem %s0, %s319
        %s321 = smul.u32 2, %s27
        %s322 = smul.u32 2, %s27
        %p323 = scmp.lt.s32.totalorder %s28, 1
        %s324 = scalar_select %p323, %s28, 1
        %s325 = smul.addr %s324, 4
        %s326 = scalar_lea.vmem %s2, %s325
        %p327 = scmp.lt.s32.totalorder %s28, 1
        %s328 = scalar_select %p327, %s28, 1
        %s329 = smul.addr %s328, 4
        %s330 = scalar_lea.vmem %s3, %s329
        %s331 = smul.u32 2, %s27
        %v333 = vld [vmem:[%s320] sm:$0xff]
        %v335 = vcombine.high %v333, %v333
        %v337 = vpack.c.bf16 %v333, %v333
        %v338 = vpack.c.bf16 %v335, %v335
        %v339 = vld [vmem:[%s268] sm:$0xff]
        %v341 = vcombine.high %v339, %v339
        %v343 = vpack.c.bf16 %v339, %v339
        %v344 = vpack.c.bf16 %v341, %v341
        %v345 = vld [vmem:[%s326] sm:$0xf]
        %v346 = vld [vmem:[%s330] sm:$0xf]
        %vm347 = vcmask 31744
        %v349 = vsel %vm347, %v346, 0
        %vm351 = vcmask 1041408
        %v353 = vsel %vm351, %v343, 0
        %v356 = vsel %vm351, %v344, 0
        %358 = vmatprep.subr.bf16.mxu0 0
        %359 = vmatpush1.bf16.msra.mxu0 0
        %360 = vmatprep.subr.bf16.mxu0 0
        %361 = vmatpush1.bf16.msra.mxu0 0
        %362 = vmatprep.subr.bf16.mxu0 0
        %363 = vmatpush1.bf16.msra.mxu0 0
        %364 = vmatprep.subr.bf16.mxu0 0
        %365 = vmatpush1.bf16.msra.mxu0 0
        %366 = vmatprep.subr.bf16.mxu0 0
        %367 = vmatpush1.bf16.msra.mxu0 0
        %368 = vmatprep.subr.bf16.mxu0 0
        %369 = vmatpush1.bf16.msra.mxu0 0
        %370 = vmatprep.subr.bf16.mxu0 0
        %371 = vmatpush1.bf16.msra.mxu0 0
        %372 = vmatprep.subr.bf16.mxu0 %v356
        %373 = vmatpush1.bf16.msra.mxu0 %v353
        %374 = vmatprep.subr.bf16.mxu0 0
        %375 = vmatpush2.bf16.msra.mxu0 0
        %376 = vmatprep.subr.bf16.mxu0 0
        %377 = vmatpush2.bf16.msra.mxu0 0
        %378 = vmatprep.subr.bf16.mxu0 0
        %379 = vmatpush2.bf16.msra.mxu0 0
        %380 = vmatprep.subr.bf16.mxu0 0
        %381 = vmatpush2.bf16.msra.mxu0 0
        %382 = vmatprep.subr.bf16.mxu0 0
        %383 = vmatpush2.bf16.msra.mxu0 0
        %384 = vmatprep.subr.bf16.mxu0 0
        %385 = vmatpush2.bf16.msra.mxu0 0
        %386 = vmatprep.subr.bf16.mxu0 0
        %387 = vmatpush2.bf16.msra.mxu0 0
        %388 = vmatprep.subr.bf16.mxu0 0
        %389 = vmatpush2.bf16.msra.mxu0 0
        %390 = vmatprep.mubr.bf16.mxu0 0
        %391 = vmatmul.mubr.bf16.gmra.mxu0 %v349
        %v392 = vpop.f32.mrf.mxu0
        %v393 = vadd.f32 0.0, %v392
        %v394 = vpop.f32.mrf.mxu0
        %v395 = vadd.f32 0.0, %v394
        %v396 = vpop.f32.mrf.mxu0
        %v397 = vpop.f32.mrf.mxu0
        %398 = vdwg.mxu0
        %v400 = vsel %vm347, %v345, 0
        %v403 = vsel %vm351, %v337, 0
        %v406 = vsel %vm351, %v338, 0
        %408 = vmatprep.subr.bf16.mxu0 0
        %409 = vmatpush1.bf16.msra.mxu0 0
        %410 = vmatprep.subr.bf16.mxu0 0
        %411 = vmatpush1.bf16.msra.mxu0 0
        %412 = vmatprep.subr.bf16.mxu0 0
        %413 = vmatpush1.bf16.msra.mxu0 0
        %414 = vmatprep.subr.bf16.mxu0 0
        %415 = vmatpush1.bf16.msra.mxu0 0
        %416 = vmatprep.subr.bf16.mxu0 0
        %417 = vmatpush1.bf16.msra.mxu0 0
        %418 = vmatprep.subr.bf16.mxu0 0
        %419 = vmatpush1.bf16.msra.mxu0 0
        %420 = vmatprep.subr.bf16.mxu0 0
        %421 = vmatpush1.bf16.msra.mxu0 0
        %422 = vmatprep.subr.bf16.mxu0 %v406
        %423 = vmatpush1.bf16.msra.mxu0 %v403
        %424 = vmatprep.subr.bf16.mxu0 0
        %425 = vmatpush2.bf16.msra.mxu0 0
        %426 = vmatprep.subr.bf16.mxu0 0
        %427 = vmatpush2.bf16.msra.mxu0 0
        %428 = vmatprep.subr.bf16.mxu0 0
        %429 = vmatpush2.bf16.msra.mxu0 0
        %430 = vmatprep.subr.bf16.mxu0 0
        %431 = vmatpush2.bf16.msra.mxu0 0
        %432 = vmatprep.subr.bf16.mxu0 0
        %433 = vmatpush2.bf16.msra.mxu0 0
        %434 = vmatprep.subr.bf16.mxu0 0
        %435 = vmatpush2.bf16.msra.mxu0 0
        %436 = vmatprep.subr.bf16.mxu0 0
        %437 = vmatpush2.bf16.msra.mxu0 0
        %438 = vmatprep.subr.bf16.mxu0 0
        %439 = vmatpush2.bf16.msra.mxu0 0
        %440 = vmatprep.mubr.bf16.mxu0 0
        %441 = vmatmul.mubr.bf16.gmra.mxu0 %v400
        %v442 = vpop.f32.mrf.mxu0
        %v443 = vadd.f32 %v393, %v442
        %v444 = vpop.f32.mrf.mxu0
        %v445 = vadd.f32 %v395, %v444
        %v446 = vpop.f32.mrf.mxu0
        %v447 = vpop.f32.mrf.mxu0
        %448 = vdwg.mxu0
        %s449 = sld [smem:[#allocation2]]
        %v450 = vstv %s449
        %v451 = vadd.f32 %v443, %v450
        %v452 = vadd.f32 %v445, %v450
        %v453 = vxor.u32 %v451, 2147483648
        %v454 = vxor.u32 %v452, 2147483648
        %v455 = vmul.f32 %v453, 1.442695
        %v456 = vpow.pop %v455
        %v457 = vmul.f32 %v454, 1.442695
        %v458 = vpow.pop %v457
        %v459 = vadd.f32 %v456, 1.0
        %v460 = vadd.f32 %v458, 1.0
        %v461 = vrcp.pop %v459
        %v462 = vmul.f32 1.0, %v461
        %v463 = vrcp.pop %v460
        %v464 = vmul.f32 1.0, %v463
        %v465 = vlaneseq
        %v466 = vshrl.u32 %v465, 7
        %v467 = vsub.s32 4, %v466
        %v468 = vrot.slane %v462, %v467
        %v469 = vlaneseq
        %v470 = vshrl.u32 %v469, 7
        %v471 = vsub.s32 4, %v470
        %v472 = vrot.slane %v464, %v471
        %v473 = vmul.f32 %v443, %v468
        %v474 = vmul.f32 %v445, %v472
        %v477 = vcombine.low %v473, %v474
        %479 = vst [vmem:[%s311] sm:$0xff] %v477
        %s480 = sand.u32 %s174, 1
        %s481 = scalar_lea.sflag [#allocation5], %s480
        %s482 = sand.u32 %s174, 1
        %s483 = smul.addr %s482, 8
        %s484 = scalar_lea.vmem [#allocation6], %s483
        // Predicated region
        $region45: #{tpu_custom_call.1} parent=39 // pred_check
          %p485 = pneg %p184
        $region46: #{tpu_custom_call.1} parent=39 // pred_check_branch
          %487 = sbr.rel (%p485) target = $region48
        $region47: #{tpu_custom_call.1} parent=39 // pred_region
          %s488 = smul.u32 2, %s27
          %s490 = ssub.s32 128, 128
          %491 = vsyncadd %s481, %s490
          %s492 = smul.addr %s28, 2
          %s493 = sadd.s32 %s488, %s492
          %s494 = smul.addr %s493, 64
          %s495 = scalar_lea.hbm %s5, %s494
          %s497 = sshll.u32 %s484, 4
          %s498 = int_to_ptr.vmem [resolvable:$true] %s497
          %500 = dma.vmem_to_hbm [thread:$0]  %s498, 128, %s495, %s481
        $region48: #{tpu_custom_call.1} parent=39 // pred_fallthru
          _
      $region40: #{tpu_custom_call.1} parent=5 // pred_fallthru
        _
      %p501 = scmp.le.s32.totalorder 2, %s18
      // Predicated region
      $region49: #{tpu_custom_call.1} parent=5 // pred_check
        %p502 = pneg %p501
      $region50: #{tpu_custom_call.1} parent=5 // pred_check_branch
        %504 = sbr.rel (%p502) target = $region52
      $region51: #{tpu_custom_call.1} parent=5 // pred_region
        %s505 = ssub.s32 %s18, 2
        // Predicated region
        $region53: #{tpu_custom_call.1} parent=51 // pred_check
          %p506 = pneg %p190
        $region54: #{tpu_custom_call.1} parent=51 // pred_check_branch
          %508 = sbr.rel (%p506) target = $region56
        $region55: #{tpu_custom_call.1} parent=51 // pred_region
          %s509 = sand.u32 %s175, 1
          %s510 = scalar_lea.sflag [#allocation5], %s509
          %s511 = sand.u32 %s175, 1
          %s512 = smul.addr %s511, 8
          %s513 = scalar_lea.vmem [#allocation6], %s512
          %514 = dma.done %s510, 128
        $region56: #{tpu_custom_call.1} parent=51 // pred_fallthru
          _
      $region52: #{tpu_custom_call.1} parent=5 // pred_fallthru
        _
    $region6: #{tpu_custom_call.1} parent=1 // loop_footer
      %s22 = sadd.s32 1, %s18
    $region7: #{tpu_custom_call.1} parent=1 // loop_footer_branch
      %17 = sbr.rel target = $region3
    $region8: #{tpu_custom_call.1} parent=1 // loop_exit
      _
    %515 = vsyncpa [#allocation4], 1
    %s516 = scalar_lea.sflag [#allocation4], 1
    %517 = vsyncpa %s516, 1
    %518 = vsyncpa [#allocation5], 1
    %s519 = scalar_lea.sflag [#allocation5], 1
    %520 = vsyncpa %s519, 1

</llo_original>
